<compile_context>
chip_gen: v6e
topology: v6e:2x2x1
jax: 0.10.0
libtpu: 0.0.40
codegen_flags: <defaults>
</compile_context>

<pallas_src>
import math
import numpy as np
import jax
import jax.numpy as jnp
from jax.experimental import pallas as pl
from jax.experimental.pallas import tpu as pltpu


# ----------------------------- Pallas kernel ------------------------------------


def sabp_score_kernel(b_ref, xw_ref, at_ref, xt_ref, score_ref, gated_t_ref, sig_ref):
    # s (1, TM) = xw (1, Npad) @ Â^T[:, tile]  -- GEMV on the MXU, f32 accumulation.
    s = jnp.dot(xw_ref[...], at_ref[...], preferred_element_type=jnp.float32)
    s = s + b_ref[0, 0]                              # GCNConv bias (scalar from SMEM)
    score_ref[...] = s                               # lane-dense (1, TM) store
    gated_t_ref[...] = xt_ref[...] * jnp.tanh(s)     # (C, TM) * (1, TM): x * tanh(score)
    sig_ref[...] = jax.nn.sigmoid(s)                 # lane-dense (1, TM) store


# --------------------------- tiling / wrapper ------------------------------------

_VMEM_BUDGET_BYTES = 48 * 1024 * 1024   # headroom under v7x's 64 MiB physical VMEM


def _round_up(v, m):
    return ((v + m - 1) // m) * m


def _pick_lane_tile(n, c_pad):
    """Largest node tile TM (lane axis) whose double-buffered slabs fit the VMEM budget."""
    n_pad = _round_up(max(int(n), 1), 128)
    for tm in (512, 256, 128):
        if n_pad % tm != 0:
            continue
        work = n_pad * tm * 2              # Â^T slab (bf16)
        work += 2 * c_pad * tm * 4         # x^T slab + gated slab (f32)
        work += 2 * tm * 4                 # score + sigmoid rows (f32)
        work += n_pad * 2                  # resident xw row (bf16)
        if 2 * work <= _VMEM_BUDGET_BYTES:  # x2: BlockSpec double-buffering
            return tm, n_pad
    # TODO(synk): for N so large that even a 128-wide full-K slab misses the VMEM budget,
    # add a second ("arbitrary") grid axis over the contraction dim with a VMEM f32
    # accumulator (pl.when init/finalize) instead of a full-K slab.
    return 128, n_pad


def sabp_scores_pallas(a_norm_t, x, w, b):
    """score, x*tanh(score), sigmoid(score) for all nodes via one tiled Pallas kernel."""
    N, C = x.shape
    C_pad = _round_up(C, 8)
    TM, N_pad = _pick_lane_tile(N, C_pad)
    grid = (N_pad // TM,)

    def run(a_t, x_in, w_in, b_in):
        x32 = x_in.astype(jnp.float32)
        xw = (x32 @ w_in.astype(jnp.float32))[:, 0]                  # (N,)  X @ W
        xw_row = jnp.zeros((1, N_pad), jnp.bfloat16).at[0, :N].set(
            xw.astype(jnp.bfloat16))
        at_pad = jnp.zeros((N_pad, N_pad), jnp.bfloat16).at[:N, :N].set(
            a_t.astype(jnp.bfloat16))                                # bf16 halves HBM traffic
        xt_pad = jnp.zeros((C_pad, N_pad), jnp.float32).at[:C, :N].set(x32.T)
        b_smem = jnp.reshape(b_in.astype(jnp.float32), (1, 1))

        score_row, gated_t, sig_row = pl.pallas_call(
            sabp_score_kernel,
            out_shape=(
                jax.ShapeDtypeStruct((1, N_pad), jnp.float32),       # score^T
                jax.ShapeDtypeStruct((C_pad, N_pad), jnp.float32),   # (x * tanh(score))^T
                jax.ShapeDtypeStruct((1, N_pad), jnp.float32),       # sigmoid(score)^T
            ),
            grid=grid,
            in_specs=[
                pl.BlockSpec(memory_space=pltpu.MemorySpace.SMEM),   # bias scalar
                pl.BlockSpec((1, N_pad), lambda j: (0, 0)),          # xw row (VMEM-resident)
                pl.BlockSpec((N_pad, TM), lambda j: (0, j)),         # Â^T lane slab (bf16)
                pl.BlockSpec((C_pad, TM), lambda j: (0, j)),         # x^T lane slab
            ],
            out_specs=(
                pl.BlockSpec((1, TM), lambda j: (0, j)),
                pl.BlockSpec((C_pad, TM), lambda j: (0, j)),
                pl.BlockSpec((1, TM), lambda j: (0, j)),
            ),
            compiler_params=pltpu.CompilerParams(
                dimension_semantics=("parallel",),   # shard tiles across v7x's 2 TCs
                vmem_limit_bytes=56 * 1024 * 1024,   # above 32 MiB default, below v7x 64 MiB
            ),
        )(b_smem, xw_row, at_pad, xt_pad)

        return score_row[0, :N], gated_t[:C, :N].T, sig_row[0, :N]

    return jax.jit(run)(a_norm_t, x, w, b)


# ------------------------------ host-side glue -----------------------------------


def gcn_norm_dense(edge_index, edge_weight, num_nodes):
    """Dense Â = D^-1/2 (A + I) D^-1/2 with A[dst, src] = w (PyG GCNConv convention)."""
    row = np.asarray(edge_index[0])
    col = np.asarray(edge_index[1])
    w = (np.ones(row.shape[0], np.float32) if edge_weight is None
         else np.asarray(edge_weight, np.float32))
    A = np.zeros((num_nodes, num_nodes), dtype=np.float32)
    np.add.at(A, (col, row), w)                                   # vectorized scatter-add
    A[np.arange(num_nodes), np.arange(num_nodes)] += 1.0          # self loops (weight 1)
    deg = A.sum(axis=1)
    d = np.where(deg > 0, deg ** -0.5, 0.0).astype(np.float32)
    return (d[:, None] * A) * d[None, :]


def topk(score, ratio, batch):
    """Per-graph top-ceil(ratio * n) node selection (dynamic output size -> host)."""
    score = np.asarray(score)
    batch = np.asarray(batch)
    chunks = []
    for b in np.unique(batch):
        idx = np.nonzero(batch == b)[0]
        k = int(math.ceil(ratio * idx.shape[0]))
        order = idx[np.argsort(-score[idx], kind="stable")]
        chunks.append(order[:k])
    return np.concatenate(chunks)


def filter_adj(edge_index, edge_attr, perm, num_nodes):
    """Keep edges whose endpoints both survive pooling, relabel nodes (host glue)."""
    mask = np.full(num_nodes, -1, dtype=np.int64)
    mask[perm] = np.arange(perm.shape[0])
    row, col = np.asarray(edge_index[0]), np.asarray(edge_index[1])
    keep = (mask[row] >= 0) & (mask[col] >= 0)
    new_ei = np.stack([mask[row[keep]], mask[col[keep]]])
    new_ea = None if edge_attr is None else np.asarray(edge_attr)[keep]
    return new_ei, new_ea


def sabp_forward(x, edge_index, edge_attr, batch, w, b, ratio=0.5):
    N = x.shape[0]
    a_hat = gcn_norm_dense(edge_index, edge_attr, N)
    a_hat_t = np.ascontiguousarray(a_hat.T)          # kernel consumes Â^T (lane-dense tiling)
    score, gated_x, sig = sabp_scores_pallas(a_hat_t, x, w, b)
    score, gated_x, sig = jax.block_until_ready((score, gated_x, sig))

    score_np = np.asarray(score)                     # == .squeeze() of the (N, 1) score
    perm = topk(score_np, ratio, batch)
    x_out = np.asarray(gated_x)[perm]                # == x[perm] * tanh(score[perm])
    batch_out = np.asarray(batch)[perm]
    ei_out, ea_out = filter_adj(edge_index, edge_attr, perm, num_nodes=N)
    # TODO(synk): per-graph top-k / filter_adj have data-dependent output shapes, so they
    # stay as host-side glue (one device->host sync per forward) rather than in-kernel ops.
    return x_out, ei_out, ea_out, batch_out, perm, np.asarray(sig)


# ----------------------------------- main -----------------------------------------

if __name__ == "__main__":
    N, C = 16, 8                                      # 2 graphs of 8 nodes each
    ratio = 0.5
    key = jax.random.PRNGKey(0)
    kx, kw, kb = jax.random.split(key, 3)

    x = jax.random.normal(kx, (N, C), dtype=jnp.float32)

    # GCNConv(in_channels=C, out_channels=1) parameters (glorot-ish deterministic init)
    w = jax.random.normal(kw, (C, 1), dtype=jnp.float32) * (1.0 / math.sqrt(C))
    b = jax.random.normal(kb, (1, 1), dtype=jnp.float32) * 0.1

    # undirected ring inside each of the two graphs
    src, dst = [], []
    for g in range(2):
        base = g * 8
        for i in range(8):
            u, v = base + i, base + (i + 1) % 8
            src += [u, v]
            dst += [v, u]
    edge_index = np.stack([np.array(src, dtype=np.int64), np.array(dst, dtype=np.int64)])
    edge_attr = None
    batch = np.array([0] * 8 + [1] * 8, dtype=np.int64)

    x_out, ei_out, ea_out, batch_out, perm, sig = sabp_forward(
        x, edge_index, edge_attr, batch, w, b, ratio=ratio
    )

    # numpy f32 reference of the in-kernel math; kernel stores Â / xw in bf16, so the
    # tolerances are relaxed accordingly (~1e-2 relative).
    a_np = gcn_norm_dense(edge_index, edge_attr, N)
    score_ref = (a_np @ (np.asarray(x) @ np.asarray(w)) + np.asarray(b)).squeeze(-1)
    gated_ref = np.asarray(x) * np.tanh(score_ref)[:, None]
    np.testing.assert_allclose(x_out, gated_ref[perm], rtol=5e-2, atol=5e-2)
    np.testing.assert_allclose(sig, 1.0 / (1.0 + np.exp(-score_ref)), rtol=5e-2, atol=5e-2)
    assert perm.shape[0] == 2 * math.ceil(ratio * 8)

    print("KERNEL_OK")
</pallas_src>

<mosaic_0001>
module attributes {stable_mosaic.version = 11 : i64} {
  func.func @sabp_score_kernel(%arg0: i32, %arg1: memref<1x1xf32, #tpu.memory_space<smem>>, %arg2: memref<1x128xbf16, #tpu.memory_space<vmem>>, %arg3: memref<128x128xbf16, #tpu.memory_space<vmem>>, %arg4: memref<8x128xf32, #tpu.memory_space<vmem>>, %arg5: memref<1x128xf32, #tpu.memory_space<vmem>>, %arg6: memref<8x128xf32, #tpu.memory_space<vmem>>, %arg7: memref<1x128xf32, #tpu.memory_space<vmem>>) attributes {dimension_semantics = [#tpu.dimension_semantics<parallel>], iteration_bounds = array<i64: 1>, scalar_prefetch = 0 : i64, scratch_operands = 0 : i64, tpu.core_type = #tpu.core_type<tc>, window_params = [{transform_indices = @transform_0, window_bounds = array<i64: 1, 1>}, {pipeline_mode = #tpu.pipeline_mode<synchronous>, transform_indices = @transform_1, window_bounds = array<i64: 1, 128>}, {transform_indices = @transform_2, window_bounds = array<i64: 128, 128>}, {transform_indices = @transform_3, window_bounds = array<i64: 8, 128>}, {transform_indices = @transform_4, window_bounds = array<i64: 1, 128>}, {transform_indices = @transform_5, window_bounds = array<i64: 8, 128>}, {transform_indices = @transform_6, window_bounds = array<i64: 1, 128>}]} {
    %c0 = arith.constant 0 : index
    %c0_0 = arith.constant 0 : index
    %0 = vector.load %arg2[%c0, %c0_0] : memref<1x128xbf16, #tpu.memory_space<vmem>>, vector<1x128xbf16>
    %c0_1 = arith.constant 0 : index
    %c0_2 = arith.constant 0 : index
    %1 = vector.load %arg3[%c0_1, %c0_2] : memref<128x128xbf16, #tpu.memory_space<vmem>>, vector<128x128xbf16>
    %cst = arith.constant dense<0.000000e+00> : vector<1x128xf32>
    %2 = tpu.matmul %0, %1, %cst {dimension_numbers = #tpu.dot_dimension_numbers<[1], [0], [0], [1], [0, 0, 1, 1], [], []>} : vector<1x128xbf16>, vector<128x128xbf16>, vector<1x128xf32> -> vector<1x128xf32>
    %c0_3 = arith.constant 0 : index
    %c0_4 = arith.constant 0 : index
    %3 = memref.load %arg1[%c0_3, %c0_4] : memref<1x1xf32, #tpu.memory_space<smem>>
    %4 = vector.broadcast %3 : f32 to vector<1x128xf32>
    %5 = arith.addf %2, %4 : vector<1x128xf32>
    %c0_5 = arith.constant 0 : index
    %c0_6 = arith.constant 0 : index
    %6 = vector.load %arg5[%c0_5, %c0_6] : memref<1x128xf32, #tpu.memory_space<vmem>>, vector<1x128xf32>
    tpu.vector_store %arg5[%c0_5, %c0_6], %5 {strides = array<i32>} : memref<1x128xf32, #tpu.memory_space<vmem>>, vector<1x128xf32>,
    %c0_7 = arith.constant 0 : index
    %c0_8 = arith.constant 0 : index
    %7 = vector.load %arg4[%c0_7, %c0_8] : memref<8x128xf32, #tpu.memory_space<vmem>>, vector<8x128xf32>
    %8 = math.tanh %5 : vector<1x128xf32>
    %9 = vector.broadcast %8 : vector<1x128xf32> to vector<8x128xf32>
    %10 = arith.mulf %7, %9 : vector<8x128xf32>
    %c0_9 = arith.constant 0 : index
    %c0_10 = arith.constant 0 : index
    %11 = vector.load %arg6[%c0_9, %c0_10] : memref<8x128xf32, #tpu.memory_space<vmem>>, vector<8x128xf32>
    tpu.vector_store %arg6[%c0_9, %c0_10], %10 {strides = array<i32>} : memref<8x128xf32, #tpu.memory_space<vmem>>, vector<8x128xf32>,
    %12 = arith.negf %5 : vector<1x128xf32>
    %13 = math.exp %12 : vector<1x128xf32>
    %cst_11 = arith.constant 1.000000e+00 : f32
    %14 = vector.broadcast %cst_11 : f32 to vector<1x128xf32>
    %15 = arith.addf %14, %13 : vector<1x128xf32>
    %16 = arith.divf %14, %15 : vector<1x128xf32>
    %c0_12 = arith.constant 0 : index
    %c0_13 = arith.constant 0 : index
    %17 = vector.load %arg7[%c0_12, %c0_13] : memref<1x128xf32, #tpu.memory_space<vmem>>, vector<1x128xf32>
    tpu.vector_store %arg7[%c0_12, %c0_13], %16 {strides = array<i32>} : memref<1x128xf32, #tpu.memory_space<vmem>>, vector<1x128xf32>,
    return
  }
  func.func @transform_0(%arg0: i32) -> (i32, i32) {
    %c0_i32 = arith.constant 0 : i32
    %c0_i32_0 = arith.constant 0 : i32
    %c0_i32_1 = arith.constant 0 : i32
    return %c0_i32, %c0_i32_0 : i32, i32
  }
  func.func @transform_1(%arg0: i32) -> (i32, i32) {
    %c0_i32 = arith.constant 0 : i32
    %c0_i32_0 = arith.constant 0 : i32
    %c0_i32_1 = arith.constant 0 : i32
    return %c0_i32, %c0_i32_0 : i32, i32
  }
  func.func @transform_2(%arg0: i32) -> (i32, i32) {
    %c0_i32 = arith.constant 0 : i32
    %c0_i32_0 = arith.constant 0 : i32
    return %c0_i32, %arg0 : i32, i32
  }
  func.func @transform_3(%arg0: i32) -> (i32, i32) {
    %c0_i32 = arith.constant 0 : i32
    %c0_i32_0 = arith.constant 0 : i32
    return %c0_i32, %arg0 : i32, i32
  }
  func.func @transform_4(%arg0: i32) -> (i32, i32) {
    %c0_i32 = arith.constant 0 : i32
    %c0_i32_0 = arith.constant 0 : i32
    return %c0_i32, %arg0 : i32, i32
  }
  func.func @transform_5(%arg0: i32) -> (i32, i32) {
    %c0_i32 = arith.constant 0 : i32
    %c0_i32_0 = arith.constant 0 : i32
    return %c0_i32, %arg0 : i32, i32
  }
  func.func @transform_6(%arg0: i32) -> (i32, i32) {
    %c0_i32 = arith.constant 0 : i32
    %c0_i32_0 = arith.constant 0 : i32
    return %c0_i32, %arg0 : i32, i32
  }
}

</mosaic_0001>

<llo_original>
// kernel: run.1
$region0: #{run.1}
  #allocation0 [shape = 'u32[]', space=smem, size = 0x4, offset = 0x4, fixed_abs, tag = 'smem constant byte address 0x4 - core index']
  #allocation1 [shape = 'u32[144,128]{1,0:T(1,128)}', space=vmem, size = 0x12000, scoped, tag = 'internal scratch']
  #allocation2 [shape = 'f32[1,1]{1,0:T(1,128)S(6)}', space=smem, size = 0x200, scoped, tag = 'scoped memory for run.1']
  %s0 = inlined_call_operand.<no memory space> [shape: f32[1,1], index: 0, kind: input, shape index: {}]
  %s1 = inlined_call_operand.vmem [shape: bf16[1,128], index: 1, kind: input, shape index: {}]
  %s2 = inlined_call_operand.vmem [shape: bf16[128,128], index: 2, kind: input, shape index: {}]
  %s3 = inlined_call_operand.vmem [shape: f32[8,128], index: 3, kind: input, shape index: {}]
  %s4 = inlined_call_operand.vmem [shape: f32[1,128], index: 4, kind: output, shape index: {0}]
  %s5 = inlined_call_operand.vmem [shape: f32[8,128], index: 5, kind: output, shape index: {1}]
  %s6 = inlined_call_operand.vmem [shape: f32[1,128], index: 6, kind: output, shape index: {2}]
  %7 = xla_tuple %s4, %s5, %s6
  %s8 = sld [smem:[#allocation0]]
  $region42: #{run.1} parent=0
    _
  %s10 = ssub.s32 1, %s8
  %s11 = scalar_select 0, %s10, %s8
  %12 = sst [smem:[#allocation2]] %s0
  // Predicated region
  $region2: #{run.1} parent=0 // pred_check
    _
  $region3: #{run.1} parent=0 // pred_check_branch
    %14 = sbr.rel (0) target = $region5
  $region4: #{run.1} parent=0 // pred_region
    _
  $region5: #{run.1} parent=0 // pred_fallthru
    _
  // Predicated region
  $region6: #{run.1} parent=0 // pred_check
    _
  $region7: #{run.1} parent=0 // pred_check_branch
    %16 = sbr.rel (0) target = $region9
  $region8: #{run.1} parent=0 // pred_region
    _
  $region9: #{run.1} parent=0 // pred_fallthru
    _
  // Predicated region
  $region10: #{run.1} parent=0 // pred_check
    _
  $region11: #{run.1} parent=0 // pred_check_branch
    %18 = sbr.rel (0) target = $region13
  $region12: #{run.1} parent=0 // pred_region
    _
  $region13: #{run.1} parent=0 // pred_fallthru
    _
  // Predicated region
  $region14: #{run.1} parent=0 // pred_check
    _
  $region15: #{run.1} parent=0 // pred_check_branch
    %20 = sbr.rel (0) target = $region17
  $region16: #{run.1} parent=0 // pred_region
    _
  $region17: #{run.1} parent=0 // pred_fallthru
    _
  %v22 = vld [vmem:[%s1] sm:$0x1]
  %v23 = vld [vmem:[%s2] sm:$0xf]
  %v24 = vld [vmem:[%s2 + $0x4] sm:$0xf]
  %v25 = vld [vmem:[%s2 + $0x8] sm:$0xf]
  %v26 = vld [vmem:[%s2 + $0xc] sm:$0xf]
  %v27 = vld [vmem:[%s2 + $0x10] sm:$0xf]
  %v28 = vld [vmem:[%s2 + $0x14] sm:$0xf]
  %v29 = vld [vmem:[%s2 + $0x18] sm:$0xf]
  %v30 = vld [vmem:[%s2 + $0x1c] sm:$0xf]
  %v31 = vld [vmem:[%s2 + $0x20] sm:$0xf]
  %v32 = vld [vmem:[%s2 + $0x24] sm:$0xf]
  %v33 = vld [vmem:[%s2 + $0x28] sm:$0xf]
  %v34 = vld [vmem:[%s2 + $0x2c] sm:$0xf]
  %v35 = vld [vmem:[%s2 + $0x30] sm:$0xf]
  %v36 = vld [vmem:[%s2 + $0x34] sm:$0xf]
  %v37 = vld [vmem:[%s2 + $0x38] sm:$0xf]
  %v38 = vld [vmem:[%s2 + $0x3c] sm:$0xf]
  %s39 = sld [smem:[#allocation2]]
  %v40 = vstv %s39
  %v57 = vunpack.c.l.b16 %v23
  %v58 = vunpack.c.l.b16 %v24
  %v59 = vunpack.c.l.b16 %v25
  %v60 = vunpack.c.l.b16 %v26
  %v61 = vunpack.c.l.b16 %v27
  %v62 = vunpack.c.l.b16 %v28
  %v63 = vunpack.c.l.b16 %v29
  %v64 = vunpack.c.l.b16 %v30
  %v65 = vunpack.c.l.b16 %v31
  %v66 = vunpack.c.l.b16 %v32
  %v67 = vunpack.c.l.b16 %v33
  %v68 = vunpack.c.l.b16 %v34
  %v69 = vunpack.c.l.b16 %v35
  %v70 = vunpack.c.l.b16 %v36
  %v71 = vunpack.c.l.b16 %v37
  %v72 = vunpack.c.l.b16 %v38
  %v73 = vpack.c.b16 %v58, %v57
  %v74 = vpack.c.b16 %v60, %v59
  %v75 = vpack.c.b16 %v62, %v61
  %v76 = vpack.c.b16 %v64, %v63
  %v77 = vpack.c.b16 %v66, %v65
  %v78 = vpack.c.b16 %v68, %v67
  %v79 = vpack.c.b16 %v70, %v69
  %v80 = vpack.c.b16 %v72, %v71
  %89 = vmatprep.subr.bf16.mxu0 0
  %90 = vmatpush1.bf16.msra.mxu0 %v80
  %91 = vmatprep.subr.bf16.mxu0 0
  %92 = vmatpush1.bf16.msra.mxu0 %v79
  %93 = vmatprep.subr.bf16.mxu0 0
  %94 = vmatpush1.bf16.msra.mxu0 %v78
  %95 = vmatprep.subr.bf16.mxu0 0
  %96 = vmatpush1.bf16.msra.mxu0 %v77
  %97 = vmatprep.subr.bf16.mxu0 0
  %98 = vmatpush1.bf16.msra.mxu0 %v76
  %99 = vmatprep.subr.bf16.mxu0 0
  %100 = vmatpush1.bf16.msra.mxu0 %v75
  %101 = vmatprep.subr.bf16.mxu0 0
  %102 = vmatpush1.bf16.msra.mxu0 %v74
  %103 = vmatprep.subr.bf16.mxu0 0
  %104 = vmatpush1.bf16.msra.mxu0 %v73
  %105 = vmatprep.subr.bf16.mxu0 0
  %106 = vmatpush2.bf16.msra.mxu0 0
  %107 = vmatprep.subr.bf16.mxu0 0
  %108 = vmatpush2.bf16.msra.mxu0 0
  %109 = vmatprep.subr.bf16.mxu0 0
  %110 = vmatpush2.bf16.msra.mxu0 0
  %111 = vmatprep.subr.bf16.mxu0 0
  %112 = vmatpush2.bf16.msra.mxu0 0
  %113 = vmatprep.subr.bf16.mxu0 0
  %114 = vmatpush2.bf16.msra.mxu0 0
  %115 = vmatprep.subr.bf16.mxu0 0
  %116 = vmatpush2.bf16.msra.mxu0 0
  %117 = vmatprep.subr.bf16.mxu0 0
  %118 = vmatpush2.bf16.msra.mxu0 0
  %119 = vmatprep.subr.bf16.mxu0 0
  %120 = vmatpush2.bf16.msra.mxu0 0
  %121 = vmatprep.mubr.bf16.mxu0 0
  %122 = vmatmul.mubr.bf16.gmra.mxu0 %v22
  %v123 = vpop.f32.mrf.mxu0
  %v124 = vadd.f32 %v40, %v123
  %v125 = vpop.f32.mrf.mxu0
  %v126 = vpop.f32.mrf.mxu0
  %v127 = vpop.f32.mrf.mxu0
  %128 = vdwg.mxu0
  %129 = vst [vmem:[%s4] sm:$0x1] %v124
  %v130 = vld [vmem:[%s3] sm:$0xff]
  %v131 = vtanh.pop %v124
  %v132 = vlaneseq
  %v133 = vshrl.u32 %v132, 7
  %v134 = vsub.s32 0, %v133
  %v135 = vrot.slane %v131, %v134
  %v136 = vmul.f32 %v130, %v135
  %137 = vst [vmem:[%s5] sm:$0xff] %v136
  %v138 = vxor.u32 %v124, 2147483648
  %v139 = vmul.f32 %v138, 1.442695
  %v140 = vpow.pop %v139
  %v141 = vadd.f32 %v140, 1.0
  %v142 = vrcp.pop %v141
  %v143 = vmul.f32 1.0, %v142
  %144 = vst [vmem:[%s6] sm:$0x1] %v143
  // Predicated region
  $region18: #{run.1} parent=0 // pred_check
    _
  $region19: #{run.1} parent=0 // pred_check_branch
    %146 = sbr.rel (0) target = $region21
  $region20: #{run.1} parent=0 // pred_region
    _
  $region21: #{run.1} parent=0 // pred_fallthru
    _
  // Predicated region
  $region22: #{run.1} parent=0 // pred_check
    _
  $region23: #{run.1} parent=0 // pred_check_branch
    %148 = sbr.rel (0) target = $region25
  $region24: #{run.1} parent=0 // pred_region
    _
  $region25: #{run.1} parent=0 // pred_fallthru
    _
  // Predicated region
  $region26: #{run.1} parent=0 // pred_check
    _
  $region27: #{run.1} parent=0 // pred_check_branch
    %150 = sbr.rel (0) target = $region29
  $region28: #{run.1} parent=0 // pred_region
    _
  $region29: #{run.1} parent=0 // pred_fallthru
    _
  // Predicated region
  $region30: #{run.1} parent=0 // pred_check
    _
  $region31: #{run.1} parent=0 // pred_check_branch
    %152 = sbr.rel (0) target = $region33
  $region32: #{run.1} parent=0 // pred_region
    _
  $region33: #{run.1} parent=0 // pred_fallthru
    _
  // Predicated region
  $region34: #{run.1} parent=0 // pred_check
    _
  $region35: #{run.1} parent=0 // pred_check_branch
    %154 = sbr.rel (0) target = $region37
  $region36: #{run.1} parent=0 // pred_region
    _
  $region37: #{run.1} parent=0 // pred_fallthru
    _
  // Predicated region
  $region38: #{run.1} parent=0 // pred_check
    _
  $region39: #{run.1} parent=0 // pred_check_branch
    %156 = sbr.rel (0) target = $region41
  $region40: #{run.1} parent=0 // pred_region
    _
  $region41: #{run.1} parent=0 // pred_fallthru
    _

</llo_original>
